<compile_context>
chip_gen: v6e
topology: v6e:2x2x1
jax: 0.10.0
libtpu: 0.0.40
codegen_flags: <defaults>
</compile_context>

<pallas_src>
import math

import jax
import jax.numpy as jnp
from jax.experimental import pallas as pl
from jax.experimental.pallas import tpu as pltpu

BN_EPS = 1e-5


def _round_up(x, m):
    return (x + m - 1) // m * m


# -----------------------------------------------------------------------------
# Pass 1: conv-as-matmul + global per-channel sum / sum-of-squares accumulation.
# -----------------------------------------------------------------------------
def _conv_stats_kernel(patches_ref, w_ref, y_ref, stats_ref):
    # patches_ref: [tm, K]      bf16
    # w_ref:       [K, E_pad]   bf16 (resident, constant block)
    # y_ref:       [tm, E_pad]  f32  raw conv output, streamed to HBM
    # stats_ref:   [16, E_pad]  f32  resident accumulator: rows 0:8 = sum partials,
    #                                rows 8:16 = sum-of-squares partials
    @pl.when(pl.program_id(0) == 0)
    def _init():
        stats_ref[...] = jnp.zeros_like(stats_ref)

    y = jnp.dot(patches_ref[...], w_ref[...], preferred_element_type=jnp.float32)
    y_ref[...] = y

    # Row-strided partial reduction: (tm, E_pad) -> (tm//8, 8, E_pad), summed over
    # the leading axis = pure VPU vreg adds (no per-tile cross-sublane XLU work).
    # The final 8 -> 1 fold happens once, in pass 2.
    tm, e_pad = y.shape
    yg = y.reshape(tm // 8, 8, e_pad)
    stats_ref[0:8, :] += jnp.sum(yg, axis=0)
    stats_ref[8:16, :] += jnp.sum(yg * yg, axis=0)


# -----------------------------------------------------------------------------
# Pass 2: fold global stats into scale/shift and normalize (in place, parallel).
# -----------------------------------------------------------------------------
def _make_bn_normalize_kernel(inv_m, eps):
    def kernel(y_ref, stats_ref, affine_ref, out_ref):
        # y_ref / out_ref: [tm, E_pad] f32 (aliased)
        # stats_ref:       [16, E_pad] f32   affine_ref: [2, E_pad] (gamma; beta)
        s = jnp.sum(stats_ref[0:8, :], axis=0, keepdims=True)     # (1, E_pad)
        ss = jnp.sum(stats_ref[8:16, :], axis=0, keepdims=True)   # (1, E_pad)
        mean = s * inv_m
        var = ss * inv_m - mean * mean          # biased variance (training-mode BN)
        scale = affine_ref[0:1, :] * jax.lax.rsqrt(var + eps)
        shift = affine_ref[1:2, :] - mean * scale
        out_ref[...] = y_ref[...] * scale + shift
    return kernel


# -----------------------------------------------------------------------------
# VMEM footprint helpers (double-buffered streaming tiles + resident blocks).
# -----------------------------------------------------------------------------
def _phase1_tile_bytes(tm, k, e_pad):
    return (2 * tm * k * 2            # patches tile (bf16) x 2 buffers
            + 2 * k * e_pad * 2       # weights (bf16) x 2 buffers
            + 2 * tm * e_pad * 4      # raw conv output tile (f32) x 2 buffers
            + 2 * 16 * e_pad * 4)     # stats accumulator


def _phase2_tile_bytes(tm, e_pad):
    return (4 * tm * e_pad * 4        # y-in + out tiles (f32), x 2 buffers each
            + 2 * 16 * e_pad * 4      # stats
            + 2 * 2 * e_pad * 4)      # gamma/beta


# -----------------------------------------------------------------------------
# Wrapper
# -----------------------------------------------------------------------------
def overlap_patch_embed(x_nchw, conv_w, conv_b, bn_gamma, bn_beta,
                        patch_size=4, stride=4, block_m=None, channels_last=False):
    """Forward of OverlapPatchEmbed: Conv2d(k=patch_size, s=stride, no pad) followed
    by BatchNorm2d with batch statistics (training mode). Returns (y, Hout, Wout).
    y is NCHW (PyTorch layout) unless channels_last=True (NHWC skips the final
    full-tensor transpose).

    conv_b is accepted for API parity but unused: with training-mode BatchNorm
    directly after the conv, a per-channel constant bias cancels exactly in
    (y - mean), so the output is mathematically identical without it.
    """
    del conv_b  # cancels in training-mode BatchNorm; see docstring.
    assert patch_size == stride, "patch-embed fast path assumes kernel_size == stride"
    N, C, H, W = x_nchw.shape
    E = conv_w.shape[0]
    ph = pw = patch_size
    Hout = (H - ph) // stride + 1
    Wout = (W - pw) // stride + 1
    M = N * Hout * Wout
    K = C * ph * pw
    E_pad = _round_up(E, 128)

    # --- tile-size selection: biggest block_m whose footprint stays v7x-safe -----
    VMEM_BUDGET = 40 * 1024 * 1024        # comfortable headroom below v7x's 64 MiB
    if block_m is None:
        block_m = max(8, min(1024, _round_up(M, 8)))
        while block_m > 8 and _phase1_tile_bytes(block_m, K, E_pad) > VMEM_BUDGET:
            block_m //= 2
    block_m = max(8, _round_up(block_m, 8))
    M_pad = _round_up(M, block_m)
    grid_m = M_pad // block_m

    # --- wrapper-side glue (layout only) ------------------------------------------
    # TODO(synk): this im2col is one XLA transpose + an extra HBM round trip; an
    # in-kernel manual-DMA gather of (ph, pw) input tiles would remove it.
    xc = x_nchw[:, :, :Hout * stride, :Wout * stride]
    patches = xc.reshape(N, C, Hout, ph, Wout, pw)
    patches = jnp.transpose(patches, (0, 2, 4, 1, 3, 5)).reshape(M, K)
    patches = patches.astype(jnp.bfloat16)
    if M_pad != M:
        # Zero rows: they produce y == 0, so they contribute nothing to sum/sumsq;
        # the stats divisor below uses the true M.
        patches = jnp.pad(patches, ((0, M_pad - M), (0, 0)))

    w_mat = conv_w.reshape(E, K).T.astype(jnp.bfloat16)               # [K, E]
    w_mat = jnp.pad(w_mat, ((0, 0), (0, E_pad - E)))                   # [K, E_pad]
    affine = jnp.stack([bn_gamma.astype(jnp.float32),
                        bn_beta.astype(jnp.float32)], axis=0)          # [2, E]
    affine = jnp.pad(affine, ((0, 0), (0, E_pad - E)))                 # pad -> out 0

    # --- pass 1: conv matmul + global per-channel sum / sumsq ----------------------
    vmem1 = min(64 * 1024 * 1024,
                max(16 * 1024 * 1024, 2 * _phase1_tile_bytes(block_m, K, E_pad)))
    y_raw, stats = pl.pallas_call(
        _conv_stats_kernel,
        out_shape=(jax.ShapeDtypeStruct((M_pad, E_pad), jnp.float32),
                   jax.ShapeDtypeStruct((16, E_pad), jnp.float32)),
        grid=(grid_m,),
        in_specs=[
            pl.BlockSpec((block_m, K), lambda i: (i, 0)),
            pl.BlockSpec((K, E_pad), lambda i: (0, 0)),
        ],
        out_specs=(
            pl.BlockSpec((block_m, E_pad), lambda i: (i, 0)),
            pl.BlockSpec((16, E_pad), lambda i: (0, 0)),      # resident accumulator
        ),
        compiler_params=pltpu.CompilerParams(
            dimension_semantics=("arbitrary",),               # accumulates over M
            vmem_limit_bytes=vmem1),
    )(patches, w_mat)

    # --- pass 2: normalize in place -------------------------------------------------
    vmem2 = min(64 * 1024 * 1024,
                max(16 * 1024 * 1024, 2 * _phase2_tile_bytes(block_m, E_pad)))
    out_flat = pl.pallas_call(
        _make_bn_normalize_kernel(1.0 / float(M), BN_EPS),
        out_shape=jax.ShapeDtypeStruct((M_pad, E_pad), jnp.float32),
        grid=(grid_m,),
        in_specs=[
            pl.BlockSpec((block_m, E_pad), lambda i: (i, 0)),
            pl.BlockSpec((16, E_pad), lambda i: (0, 0)),
            pl.BlockSpec((2, E_pad), lambda i: (0, 0)),
        ],
        out_specs=pl.BlockSpec((block_m, E_pad), lambda i: (i, 0)),
        input_output_aliases={0: 0},                           # normalize y_raw in place
        compiler_params=pltpu.CompilerParams(
            dimension_semantics=("parallel",),                 # shard M across TCs (v7x)
            vmem_limit_bytes=vmem2),
    )(y_raw, stats, affine)

    # --- un-pad + layout ------------------------------------------------------------
    y = out_flat[:M, :E].reshape(N, Hout, Wout, E)
    if not channels_last:
        # NCHW to match the PyTorch module; use channels_last=True to skip this
        # full-tensor transpose when the consumer accepts NHWC.
        y = jnp.transpose(y, (0, 3, 1, 2))
    return y, Hout, Wout


# -----------------------------------------------------------------------------
# Pure-JAX reference (f32 conv + training-mode BatchNorm2d).
# -----------------------------------------------------------------------------
def _reference(x_nchw, conv_w, conv_b, bn_gamma, bn_beta, stride=4):
    y = jax.lax.conv_general_dilated(
        x_nchw.astype(jnp.float32), conv_w.astype(jnp.float32),
        window_strides=(stride, stride), padding="VALID",
        dimension_numbers=("NCHW", "OIHW", "NCHW"),
        precision=jax.lax.Precision.HIGHEST)
    y = y + conv_b.reshape(1, -1, 1, 1)
    mean = jnp.mean(y, axis=(0, 2, 3), keepdims=True)
    var = jnp.mean((y - mean) ** 2, axis=(0, 2, 3), keepdims=True)
    y = (y - mean) * jax.lax.rsqrt(var + BN_EPS)
    return y * bn_gamma.reshape(1, -1, 1, 1) + bn_beta.reshape(1, -1, 1, 1)


if __name__ == "__main__":
    # Small shapes consistent with the module: batch=2, in_chans=1, spatial=32.
    N, C, H, W = 2, 1, 32, 32
    patch = stride = 4
    embed_dim = 16

    key = jax.random.PRNGKey(0)
    kx, kw = jax.random.split(key)
    x = jax.random.normal(kx, (N, C, H, W), dtype=jnp.float32)

    # _init_weights for nn.Conv2d: weight ~ N(0, sqrt(2/fan_out)), bias = 0.
    fan_out = patch * patch * embed_dim
    conv_w = jax.random.normal(kw, (embed_dim, C, patch, patch),
                               dtype=jnp.float32) * math.sqrt(2.0 / fan_out)
    conv_b = jnp.zeros((embed_dim,), jnp.float32)
    # BatchNorm2d default init: weight=1, bias=0.
    bn_gamma = jnp.ones((embed_dim,), jnp.float32)
    bn_beta = jnp.zeros((embed_dim,), jnp.float32)

    fwd = jax.jit(overlap_patch_embed,
                  static_argnames=("patch_size", "stride", "block_m", "channels_last"))
    # block_m=32 so the small demo still exercises the tiled / multi-step grid path.
    y, Hout, Wout = fwd(x, conv_w, conv_b, bn_gamma, bn_beta,
                        patch_size=patch, stride=stride, block_m=32)
    y = jax.block_until_ready(y)

    # The kernel's matmul operands are bf16 (f32 accumulation), so compare against
    # an f32 reference built from the same bf16-rounded operands.
    x_r = x.astype(jnp.bfloat16).astype(jnp.float32)
    w_r = conv_w.astype(jnp.bfloat16).astype(jnp.float32)
    y_ref = _reference(x_r, w_r, conv_b, bn_gamma, bn_beta, stride=stride)

    Hout_exp = (H - patch) // stride + 1
    Wout_exp = (W - patch) // stride + 1
    assert y.shape == (N, embed_dim, Hout_exp, Wout_exp), y.shape
    assert int(Hout) == Hout_exp and int(Wout) == Wout_exp
    assert jnp.allclose(y, y_ref, atol=1e-3, rtol=1e-3), (
        "mismatch vs reference: max abs err "
        f"{float(jnp.max(jnp.abs(y - y_ref)))}")
    print("KERNEL_OK")
</pallas_src>

<mosaic_0001>
module attributes {stable_mosaic.version = 11 : i64} {
  func.func @_conv_stats_kernel(%arg0: i32, %arg1: memref<32x16xbf16, #tpu.memory_space<vmem>>, %arg2: memref<16x128xbf16, #tpu.memory_space<vmem>>, %arg3: memref<32x128xf32, #tpu.memory_space<vmem>>, %arg4: memref<16x128xf32, #tpu.memory_space<vmem>>) attributes {dimension_semantics = [#tpu.dimension_semantics<arbitrary>], iteration_bounds = array<i64: 4>, scalar_prefetch = 0 : i64, scratch_operands = 0 : i64, tpu.core_type = #tpu.core_type<tc>, window_params = [{transform_indices = @transform_0, window_bounds = array<i64: 32, 16>}, {pipeline_mode = #tpu.pipeline_mode<synchronous>, transform_indices = @transform_1, window_bounds = array<i64: 16, 128>}, {transform_indices = @transform_2, window_bounds = array<i64: 32, 128>}, {pipeline_mode = #tpu.pipeline_mode<synchronous>, transform_indices = @transform_3, window_bounds = array<i64: 16, 128>}]} {
    %c0_i32 = arith.constant 0 : i32
    %0 = arith.cmpi eq, %arg0, %c0_i32 : i32
    %1 = arith.extui %0 : i1 to i32
    %c0_i32_0 = arith.constant 0 : i32
    %2 = arith.cmpi ne, %1, %c0_i32_0 : i32
    scf.if %2 {
      %cst_15 = arith.constant 0.000000e+00 : f32
      %17 = vector.broadcast %cst_15 : f32 to vector<16x128xf32>
      %c0_16 = arith.constant 0 : index
      %c0_17 = arith.constant 0 : index
      %18 = vector.load %arg4[%c0_16, %c0_17] : memref<16x128xf32, #tpu.memory_space<vmem>>, vector<16x128xf32>
      tpu.vector_store %arg4[%c0_16, %c0_17], %17 {strides = array<i32>} : memref<16x128xf32, #tpu.memory_space<vmem>>, vector<16x128xf32>,
    } else {
    }
    %c0 = arith.constant 0 : index
    %c0_1 = arith.constant 0 : index
    %3 = vector.load %arg1[%c0, %c0_1] : memref<32x16xbf16, #tpu.memory_space<vmem>>, vector<32x16xbf16>
    %c0_2 = arith.constant 0 : index
    %c0_3 = arith.constant 0 : index
    %4 = vector.load %arg2[%c0_2, %c0_3] : memref<16x128xbf16, #tpu.memory_space<vmem>>, vector<16x128xbf16>
    %cst = arith.constant dense<0.000000e+00> : vector<32x128xf32>
    %5 = tpu.matmul %3, %4, %cst {dimension_numbers = #tpu.dot_dimension_numbers<[1], [0], [0], [1], [0, 0, 1, 1], [], []>} : vector<32x16xbf16>, vector<16x128xbf16>, vector<32x128xf32> -> vector<32x128xf32>
    %c0_4 = arith.constant 0 : index
    %c0_5 = arith.constant 0 : index
    %6 = vector.load %arg3[%c0_4, %c0_5] : memref<32x128xf32, #tpu.memory_space<vmem>>, vector<32x128xf32>
    tpu.vector_store %arg3[%c0_4, %c0_5], %5 {strides = array<i32>} : memref<32x128xf32, #tpu.memory_space<vmem>>, vector<32x128xf32>,
    %7 = vector.shape_cast %5 : vector<32x128xf32> to vector<4x8x128xf32>
    %c0_6 = arith.constant 0 : index
    %c0_7 = arith.constant 0 : index
    %8 = vector.load %arg4[%c0_6, %c0_7] : memref<16x128xf32, #tpu.memory_space<vmem>>, vector<8x128xf32>
    %cst_8 = arith.constant dense<0.000000e+00> : vector<8x128xf32>
    %9 = vector.multi_reduction <add>, %7, %cst_8 [0] : vector<4x8x128xf32> to vector<8x128xf32>
    %10 = arith.addf %8, %9 : vector<8x128xf32>
    %c0_9 = arith.constant 0 : index
    %c0_10 = arith.constant 0 : index
    %11 = vector.load %arg4[%c0_9, %c0_10] : memref<16x128xf32, #tpu.memory_space<vmem>>, vector<8x128xf32>
    tpu.vector_store %arg4[%c0_9, %c0_10], %10 {strides = array<i32>} : memref<16x128xf32, #tpu.memory_space<vmem>>, vector<8x128xf32>,
    %c8 = arith.constant 8 : index
    %c0_11 = arith.constant 0 : index
    %12 = vector.load %arg4[%c8, %c0_11] : memref<16x128xf32, #tpu.memory_space<vmem>>, vector<8x128xf32>
    %13 = arith.mulf %7, %7 : vector<4x8x128xf32>
    %cst_12 = arith.constant dense<0.000000e+00> : vector<8x128xf32>
    %14 = vector.multi_reduction <add>, %13, %cst_12 [0] : vector<4x8x128xf32> to vector<8x128xf32>
    %15 = arith.addf %12, %14 : vector<8x128xf32>
    %c8_13 = arith.constant 8 : index
    %c0_14 = arith.constant 0 : index
    %16 = vector.load %arg4[%c8_13, %c0_14] : memref<16x128xf32, #tpu.memory_space<vmem>>, vector<8x128xf32>
    tpu.vector_store %arg4[%c8_13, %c0_14], %15 {strides = array<i32>} : memref<16x128xf32, #tpu.memory_space<vmem>>, vector<8x128xf32>,
    return
  }
  func.func @transform_0(%arg0: i32) -> (i32, i32) {
    %c0_i32 = arith.constant 0 : i32
    %c0_i32_0 = arith.constant 0 : i32
    return %arg0, %c0_i32 : i32, i32
  }
  func.func @transform_1(%arg0: i32) -> (i32, i32) {
    %c0_i32 = arith.constant 0 : i32
    %c0_i32_0 = arith.constant 0 : i32
    %c0_i32_1 = arith.constant 0 : i32
    return %c0_i32, %c0_i32_0 : i32, i32
  }
  func.func @transform_2(%arg0: i32) -> (i32, i32) {
    %c0_i32 = arith.constant 0 : i32
    %c0_i32_0 = arith.constant 0 : i32
    return %arg0, %c0_i32 : i32, i32
  }
  func.func @transform_3(%arg0: i32) -> (i32, i32) {
    %c0_i32 = arith.constant 0 : i32
    %c0_i32_0 = arith.constant 0 : i32
    %c0_i32_1 = arith.constant 0 : i32
    return %c0_i32, %c0_i32_0 : i32, i32
  }
}

module attributes {stable_mosaic.version = 11 : i64} {
  func.func @kernel(%arg0: i32, %arg1: memref<32x128xf32, #tpu.memory_space<vmem>>, %arg2: memref<16x128xf32, #tpu.memory_space<vmem>>, %arg3: memref<2x128xf32, #tpu.memory_space<vmem>>, %arg4: memref<32x128xf32, #tpu.memory_space<vmem>>) attributes {dimension_semantics = [#tpu.dimension_semantics<parallel>], iteration_bounds = array<i64: 4>, scalar_prefetch = 0 : i64, scratch_operands = 0 : i64, tpu.core_type = #tpu.core_type<tc>, window_params = [{transform_indices = @transform_0, window_bounds = array<i64: 32, 128>}, {pipeline_mode = #tpu.pipeline_mode<synchronous>, transform_indices = @transform_1, window_bounds = array<i64: 16, 128>}, {pipeline_mode = #tpu.pipeline_mode<synchronous>, transform_indices = @transform_2, window_bounds = array<i64: 2, 128>}, {transform_indices = @transform_3, window_bounds = array<i64: 32, 128>}]} {
    %c0 = arith.constant 0 : index
    %c0_0 = arith.constant 0 : index
    %0 = vector.load %arg2[%c0, %c0_0] : memref<16x128xf32, #tpu.memory_space<vmem>>, vector<8x128xf32>
    %cst = arith.constant dense<0.000000e+00> : vector<128xf32>
    %1 = vector.multi_reduction <add>, %0, %cst [0] : vector<8x128xf32> to vector<128xf32>
    %2 = vector.shape_cast %1 : vector<128xf32> to vector<1x128xf32>
    %c8 = arith.constant 8 : index
    %c0_1 = arith.constant 0 : index
    %3 = vector.load %arg2[%c8, %c0_1] : memref<16x128xf32, #tpu.memory_space<vmem>>, vector<8x128xf32>
    %cst_2 = arith.constant dense<0.000000e+00> : vector<128xf32>
    %4 = vector.multi_reduction <add>, %3, %cst_2 [0] : vector<8x128xf32> to vector<128xf32>
    %5 = vector.shape_cast %4 : vector<128xf32> to vector<1x128xf32>
    %cst_3 = arith.constant 7.812500e-03 : f32
    %6 = vector.broadcast %cst_3 : f32 to vector<1x128xf32>
    %7 = arith.mulf %2, %6 : vector<1x128xf32>
    %cst_4 = arith.constant 7.812500e-03 : f32
    %8 = vector.broadcast %cst_4 : f32 to vector<1x128xf32>
    %9 = arith.mulf %5, %8 : vector<1x128xf32>
    %10 = arith.mulf %7, %7 : vector<1x128xf32>
    %11 = arith.subf %9, %10 : vector<1x128xf32>
    %c0_5 = arith.constant 0 : index
    %c0_6 = arith.constant 0 : index
    %12 = vector.load %arg3[%c0_5, %c0_6] : memref<2x128xf32, #tpu.memory_space<vmem>>, vector<1x128xf32>
    %cst_7 = arith.constant 9.99999974E-6 : f32
    %13 = vector.broadcast %cst_7 : f32 to vector<1x128xf32>
    %14 = arith.addf %11, %13 : vector<1x128xf32>
    %15 = math.rsqrt %14 : vector<1x128xf32>
    %16 = arith.mulf %12, %15 : vector<1x128xf32>
    %c1 = arith.constant 1 : index
    %c0_8 = arith.constant 0 : index
    %17 = vector.load %arg3[%c1, %c0_8] : memref<2x128xf32, #tpu.memory_space<vmem>>, vector<1x128xf32>
    %18 = arith.mulf %7, %16 : vector<1x128xf32>
    %19 = arith.subf %17, %18 : vector<1x128xf32>
    %c0_9 = arith.constant 0 : index
    %c0_10 = arith.constant 0 : index
    %20 = vector.load %arg1[%c0_9, %c0_10] : memref<32x128xf32, #tpu.memory_space<vmem>>, vector<32x128xf32>
    %21 = vector.broadcast %16 : vector<1x128xf32> to vector<32x128xf32>
    %22 = arith.mulf %20, %21 : vector<32x128xf32>
    %23 = vector.broadcast %19 : vector<1x128xf32> to vector<32x128xf32>
    %24 = arith.addf %22, %23 : vector<32x128xf32>
    %c0_11 = arith.constant 0 : index
    %c0_12 = arith.constant 0 : index
    %25 = vector.load %arg4[%c0_11, %c0_12] : memref<32x128xf32, #tpu.memory_space<vmem>>, vector<32x128xf32>
    tpu.vector_store %arg4[%c0_11, %c0_12], %24 {strides = array<i32>} : memref<32x128xf32, #tpu.memory_space<vmem>>, vector<32x128xf32>,
    return
  }
  func.func @transform_0(%arg0: i32) -> (i32, i32) {
    %c0_i32 = arith.constant 0 : i32
    %c0_i32_0 = arith.constant 0 : i32
    return %arg0, %c0_i32 : i32, i32
  }
  func.func @transform_1(%arg0: i32) -> (i32, i32) {
    %c0_i32 = arith.constant 0 : i32
    %c0_i32_0 = arith.constant 0 : i32
    %c0_i32_1 = arith.constant 0 : i32
    return %c0_i32, %c0_i32_0 : i32, i32
  }
  func.func @transform_2(%arg0: i32) -> (i32, i32) {
    %c0_i32 = arith.constant 0 : i32
    %c0_i32_0 = arith.constant 0 : i32
    %c0_i32_1 = arith.constant 0 : i32
    return %c0_i32, %c0_i32_0 : i32, i32
  }
  func.func @transform_3(%arg0: i32) -> (i32, i32) {
    %c0_i32 = arith.constant 0 : i32
    %c0_i32_0 = arith.constant 0 : i32
    return %arg0, %c0_i32 : i32, i32
  }
}

</mosaic_0001>

<llo_original>
// kernel: overlap_patch_embed.3
$region0: #{overlap_patch_embed.3}
  #allocation0 [shape = 'u32[]', space=smem, size = 0x4, offset = 0x4, fixed_abs, tag = 'smem constant byte address 0x4 - core index']
  #allocation1 [shape = 'u32[144,128]{1,0:T(1,128)}', space=vmem, size = 0x12000, scoped, tag = 'internal scratch']
  %s0 = inlined_call_operand.vmem [shape: f32[128,128], index: 0, kind: input, shape index: {}, may-alias: {0,3}]
  %s1 = inlined_call_operand.vmem [shape: f32[16,128], index: 1, kind: input, shape index: {}]
  %s2 = inlined_call_operand.vmem [shape: f32[2,128], index: 2, kind: input, shape index: {}]
  %s3 = inlined_call_operand.vmem [shape: f32[128,128], index: 3, kind: output, shape index: {}, may-alias: {0,3}]
  %s4 = sld [smem:[#allocation0]]
  $region45: #{overlap_patch_embed.3} parent=0
    _
  %s6 = ssub.s32 1, %s4
  %s7 = scalar_select 0, %s6, %s4
  loop: start=0, step=1, limit=6
  $region2: #{overlap_patch_embed.3} parent=0 // loop_pre_header
    _
  $region3: #{overlap_patch_embed.3} parent=0 // loop_header
    %s9 = sphi 0, %s13
    %p10 = scmp.ge.s32.totalorder %s9, 6
    %s19 = sphi 0, %s21
    %s22 = sphi 0, %s19
    %s23 = sphi 0, %s22
    %s39 = sphi 0, %s23
    %s43 = sphi 0, %s43
    %s45 = sphi 0, %s43
    %s46 = sphi 0, %s45
    %s60 = sphi 0, %s46
    %s64 = sphi 0, %s64
    %s66 = sphi 0, %s64
    %s67 = sphi 0, %s66
    %s81 = sphi 0, %s67
    %s87 = sphi 0, %s89
    %s90 = sphi 0, %s87
    %s91 = sphi 0, %s90
    %s107 = sphi 0, %s91
  $region4: #{overlap_patch_embed.3} parent=0 // loop_header_branch
    %12 = sbr.rel (%p10) target = $region8
  $region5: #{overlap_patch_embed.3} parent=0 // loop_body
    %s14 = ssub.s32 %s9, 1
    %s15 = ssub.s32 %s9, 2
    %s16 = sadd.s32 %s9, 1
    %s17 = ssub.s32 %s9, %s16
    %p18 = scmp.eq.s32.totalorder %s17, 0
    %s20 = sadd.s32 %s19, 1
    %s21 = scalar_select %p18, %s19, %s20
    %p24 = pneg %p18
    %p25 = scmp.eq.s32.totalorder %s9, 3
    %p26 = por %p24, %p25
    %p27 = scmp.ne.s32.totalorder %s19, %s22
    %p28 = scmp.eq.s32.totalorder %s9, 0
    %p29 = por %p27, %p28
    %p30 = scmp.ne.s32.totalorder %s19, %s22
    %p31 = scmp.eq.s32.totalorder %s14, 3
    %p32 = por %p30, %p31
    %p33 = scmp.ne.s32.totalorder %s22, %s23
    %p34 = scmp.eq.s32.totalorder %s14, 0
    %p35 = por %p33, %p34
    %p36 = scmp.ne.s32.totalorder %s22, %s23
    %p37 = scmp.eq.s32.totalorder %s15, 3
    %p38 = por %p36, %p37
    %p40 = scmp.ne.s32.totalorder %s23, %s39
    %p41 = scmp.eq.s32.totalorder %s15, 0
    %p42 = por %p40, %p41
    %s44 = sadd.s32 %s43, 1
    %p47 = scmp.eq.s32.totalorder %s9, 3
    %p48 = scmp.ne.s32.totalorder %s43, %s45
    %p49 = scmp.eq.s32.totalorder %s9, 0
    %p50 = por %p48, %p49
    %p51 = scmp.ne.s32.totalorder %s43, %s45
    %p52 = scmp.eq.s32.totalorder %s14, 3
    %p53 = por %p51, %p52
    %p54 = scmp.ne.s32.totalorder %s45, %s46
    %p55 = scmp.eq.s32.totalorder %s14, 0
    %p56 = por %p54, %p55
    %p57 = scmp.ne.s32.totalorder %s45, %s46
    %p58 = scmp.eq.s32.totalorder %s15, 3
    %p59 = por %p57, %p58
    %p61 = scmp.ne.s32.totalorder %s46, %s60
    %p62 = scmp.eq.s32.totalorder %s15, 0
    %p63 = por %p61, %p62
    %s65 = sadd.s32 %s64, 1
    %p68 = scmp.eq.s32.totalorder %s9, 3
    %p69 = scmp.ne.s32.totalorder %s64, %s66
    %p70 = scmp.eq.s32.totalorder %s9, 0
    %p71 = por %p69, %p70
    %p72 = scmp.ne.s32.totalorder %s64, %s66
    %p73 = scmp.eq.s32.totalorder %s14, 3
    %p74 = por %p72, %p73
    %p75 = scmp.ne.s32.totalorder %s66, %s67
    %p76 = scmp.eq.s32.totalorder %s14, 0
    %p77 = por %p75, %p76
    %p78 = scmp.ne.s32.totalorder %s66, %s67
    %p79 = scmp.eq.s32.totalorder %s15, 3
    %p80 = por %p78, %p79
    %p82 = scmp.ne.s32.totalorder %s67, %s81
    %p83 = scmp.eq.s32.totalorder %s15, 0
    %p84 = por %p82, %p83
    %s85 = ssub.s32 %s9, %s16
    %p86 = scmp.eq.s32.totalorder %s85, 0
    %s88 = sadd.s32 %s87, 1
    %s89 = scalar_select %p86, %s87, %s88
    %p92 = pneg %p86
    %p93 = scmp.eq.s32.totalorder %s9, 3
    %p94 = por %p92, %p93
    %p95 = scmp.ne.s32.totalorder %s87, %s90
    %p96 = scmp.eq.s32.totalorder %s9, 0
    %p97 = por %p95, %p96
    %p98 = scmp.ne.s32.totalorder %s87, %s90
    %p99 = scmp.eq.s32.totalorder %s14, 3
    %p100 = por %p98, %p99
    %p101 = scmp.ne.s32.totalorder %s90, %s91
    %p102 = scmp.eq.s32.totalorder %s14, 0
    %p103 = por %p101, %p102
    %p104 = scmp.ne.s32.totalorder %s90, %s91
    %p105 = scmp.eq.s32.totalorder %s15, 3
    %p106 = por %p104, %p105
    %p108 = scmp.ne.s32.totalorder %s91, %s107
    %p109 = scmp.eq.s32.totalorder %s15, 0
    %p110 = por %p108, %p109
    %p111 = scmp.le.s32.totalorder 1, %s9
    %p112 = scmp.lt.s32.totalorder %s9, 5
    %p113 = pnand %p111, %p112
    %p114 = pneg %p113
    // Predicated region
    $region9: #{overlap_patch_embed.3} parent=5 // pred_check
      _
    $region10: #{overlap_patch_embed.3} parent=5 // pred_check_branch
      %116 = sbr.rel (%p113) target = $region12
    $region11: #{overlap_patch_embed.3} parent=5 // pred_region
      %s117 = ssub.s32 %s9, 1
      // Predicated region
      $region13: #{overlap_patch_embed.3} parent=11 // pred_check
        %p118 = pneg %p56
      $region14: #{overlap_patch_embed.3} parent=11 // pred_check_branch
        %120 = sbr.rel (%p118) target = $region16
      $region15: #{overlap_patch_embed.3} parent=11 // pred_region
        _
      $region16: #{overlap_patch_embed.3} parent=11 // pred_fallthru
        _
      // Predicated region
      $region17: #{overlap_patch_embed.3} parent=11 // pred_check
        %p121 = pneg %p77
      $region18: #{overlap_patch_embed.3} parent=11 // pred_check_branch
        %123 = sbr.rel (%p121) target = $region20
      $region19: #{overlap_patch_embed.3} parent=11 // pred_region
        _
      $region20: #{overlap_patch_embed.3} parent=11 // pred_fallthru
        _
    $region12: #{overlap_patch_embed.3} parent=5 // pred_fallthru
      _
    %p124 = scmp.lt.s32.totalorder %s9, 4
    // Predicated region
    $region21: #{overlap_patch_embed.3} parent=5 // pred_check
      %p125 = pneg %p124
    $region22: #{overlap_patch_embed.3} parent=5 // pred_check_branch
      %127 = sbr.rel (%p125) target = $region24
    $region23: #{overlap_patch_embed.3} parent=5 // pred_region
      // Predicated region
      $region25: #{overlap_patch_embed.3} parent=23 // pred_check
        %p128 = pneg %p29
      $region26: #{overlap_patch_embed.3} parent=23 // pred_check_branch
        %130 = sbr.rel (%p128) target = $region28
      $region27: #{overlap_patch_embed.3} parent=23 // pred_region
        %s131 = smul.u32 4, %s9
        %p132 = scmp.lt.s32.totalorder %s131, 15
        %s133 = scalar_select %p132, %s131, 15
        %s134 = smul.addr %s133, 8
        %s135 = scalar_lea.vmem %s0, %s134
        %s136 = smul.u32 4, %s9
      $region28: #{overlap_patch_embed.3} parent=23 // pred_fallthru
        _
    $region24: #{overlap_patch_embed.3} parent=5 // pred_fallthru
      _
    %p137 = scmp.le.s32.totalorder 1, %s9
    %p138 = scmp.lt.s32.totalorder %s9, 5
    %p139 = pnand %p137, %p138
    %p140 = pneg %p139
    // Predicated region
    $region29: #{overlap_patch_embed.3} parent=5 // pred_check
      _
    $region30: #{overlap_patch_embed.3} parent=5 // pred_check_branch
      %142 = sbr.rel (%p139) target = $region32
    $region31: #{overlap_patch_embed.3} parent=5 // pred_region
      %s143 = ssub.s32 %s9, 1
      %s144 = smul.u32 4, %s14
      %p145 = scmp.lt.s32.totalorder %s144, 15
      %s146 = scalar_select %p145, %s144, 15
      %s147 = smul.addr %s146, 8
      %s148 = scalar_lea.vmem %s0, %s147
      %p149 = pneg %p35
      %p150 = pneg %p32
      %p151 = pneg %p56
      %p152 = pneg %p53
      %p153 = pneg %p77
      %p154 = pneg %p74
      %p155 = pneg %p103
      %p156 = pneg %p100
      %s157 = smul.u32 4, %s14
      %p158 = scmp.lt.s32.totalorder %s157, 15
      %s159 = scalar_select %p158, %s157, 15
      %s160 = smul.addr %s159, 8
      %s161 = scalar_lea.vmem %s3, %s160
      %s162 = smul.u32 4, %s14
      %p163 = scmp.lt.s32.totalorder %s162, 15
      %s164 = scalar_select %p163, %s162, 15
      %s165 = smul.addr %s164, 8
      %s166 = scalar_lea.vmem %s0, %s165
      %s167 = smul.u32 4, %s14
      %s168 = smul.u32 4, %s14
      %p169 = scmp.lt.s32.totalorder %s168, 15
      %s170 = scalar_select %p169, %s168, 15
      %s171 = smul.addr %s170, 8
      %s172 = scalar_lea.vmem %s3, %s171
      %s173 = smul.u32 4, %s14
      %v174 = vld [vmem:[%s1] sm:$0xff]
      %v175 = vrot.slane %v174, 4
      %v176 = vadd.f32 %v174, %v175
      %v177 = vrot.slane %v176, 2
      %v178 = vadd.f32 %v176, %v177
      %v179 = vrot.slane %v178, 1
      %v180 = vadd.f32 %v178, %v179
      %v181 = vld [vmem:[%s1 + $0x8] sm:$0xff]
      %v182 = vrot.slane %v181, 4
      %v183 = vadd.f32 %v181, %v182
      %v184 = vrot.slane %v183, 2
      %v185 = vadd.f32 %v183, %v184
      %v186 = vrot.slane %v185, 1
      %v187 = vadd.f32 %v185, %v186
      %v188 = vmul.f32 %v180, 0.0078125
      %v189 = vmul.f32 %v187, 0.0078125
      %v190 = vmul.f32 %v188, %v188
      %v191 = vsub.f32 %v189, %v190
      %v192 = vld [vmem:[%s2] sm:$0x1]
      %v193 = vadd.f32 %v191, 1e-05
      %v194 = vrsqrt.pop %v193
      %v195 = vmul.f32 %v192, %v194
      %v196 = vld [vmem:[%s2 + $0x1] sm:$0x1]
      %v197 = vmul.f32 %v188, %v195
      %v198 = vsub.f32 %v196, %v197
      %v199 = vld [vmem:[%s166] sm:$0xff]
      %v200 = vld [vmem:[%s166 + $0x8] sm:$0xff]
      %v201 = vld [vmem:[%s166 + $0x10] sm:$0xff]
      %v202 = vld [vmem:[%s166 + $0x18] sm:$0xff]
      %v203 = vlaneseq
      %v204 = vshrl.u32 %v203, 7
      %v205 = vsub.s32 0, %v204
      %v206 = vrot.slane %v195, %v205
      %v207 = vmul.f32 %v199, %v206
      %v208 = vmul.f32 %v200, %v206
      %v209 = vmul.f32 %v201, %v206
      %v210 = vmul.f32 %v202, %v206
      %v211 = vlaneseq
      %v212 = vshrl.u32 %v211, 7
      %v213 = vsub.s32 0, %v212
      %v214 = vrot.slane %v198, %v213
      %v215 = vadd.f32 %v207, %v214
      %v216 = vadd.f32 %v208, %v214
      %v217 = vadd.f32 %v209, %v214
      %v218 = vadd.f32 %v210, %v214
      %219 = vst [vmem:[%s172] sm:$0xff] %v215
      %220 = vst [vmem:[%s172 + $0x8] sm:$0xff] %v216
      %221 = vst [vmem:[%s172 + $0x10] sm:$0xff] %v217
      %222 = vst [vmem:[%s172 + $0x18] sm:$0xff] %v218
      %s223 = smul.u32 4, %s14
      %p224 = scmp.lt.s32.totalorder %s223, 15
      %s225 = scalar_select %p224, %s223, 15
      %s226 = smul.addr %s225, 8
      %s227 = scalar_lea.vmem %s3, %s226
      // Predicated region
      $region33: #{overlap_patch_embed.3} parent=31 // pred_check
        %p228 = pneg %p100
      $region34: #{overlap_patch_embed.3} parent=31 // pred_check_branch
        %230 = sbr.rel (%p228) target = $region36
      $region35: #{overlap_patch_embed.3} parent=31 // pred_region
        %s231 = smul.u32 4, %s14
      $region36: #{overlap_patch_embed.3} parent=31 // pred_fallthru
        _
    $region32: #{overlap_patch_embed.3} parent=5 // pred_fallthru
      _
    %p232 = scmp.le.s32.totalorder 2, %s9
    // Predicated region
    $region37: #{overlap_patch_embed.3} parent=5 // pred_check
      %p233 = pneg %p232
    $region38: #{overlap_patch_embed.3} parent=5 // pred_check_branch
      %235 = sbr.rel (%p233) target = $region40
    $region39: #{overlap_patch_embed.3} parent=5 // pred_region
      %s236 = ssub.s32 %s9, 2
      // Predicated region
      $region41: #{overlap_patch_embed.3} parent=39 // pred_check
        %p237 = pneg %p106
      $region42: #{overlap_patch_embed.3} parent=39 // pred_check_branch
        %239 = sbr.rel (%p237) target = $region44
      $region43: #{overlap_patch_embed.3} parent=39 // pred_region
        %s240 = smul.u32 4, %s15
        %p241 = scmp.lt.s32.totalorder %s240, 15
        %s242 = scalar_select %p241, %s240, 15
        %s243 = smul.addr %s242, 8
        %s244 = scalar_lea.vmem %s3, %s243
      $region44: #{overlap_patch_embed.3} parent=39 // pred_fallthru
        _
    $region40: #{overlap_patch_embed.3} parent=5 // pred_fallthru
      _
  $region6: #{overlap_patch_embed.3} parent=0 // loop_footer
    %s13 = sadd.s32 1, %s9
  $region7: #{overlap_patch_embed.3} parent=0 // loop_footer_branch
    %8 = sbr.rel target = $region3
  $region8: #{overlap_patch_embed.3} parent=0 // loop_exit
    _

// kernel: overlap_patch_embed.2
$region0: #{overlap_patch_embed.2}
  #allocation0 [shape = 'u32[]', space=smem, size = 0x4, offset = 0x4, fixed_abs, tag = 'smem constant byte address 0x4 - core index']
  #allocation1 [shape = 'u32[144,128]{1,0:T(1,128)}', space=vmem, size = 0x12000, scoped, tag = 'internal scratch']
  %s0 = inlined_call_operand.vmem [shape: bf16[128,16], index: 0, kind: input, shape index: {}]
  %s1 = inlined_call_operand.vmem [shape: bf16[16,128], index: 1, kind: input, shape index: {}]
  %s2 = inlined_call_operand.vmem [shape: f32[128,128], index: 2, kind: output, shape index: {0}]
  %s3 = inlined_call_operand.vmem [shape: f32[16,128], index: 3, kind: output, shape index: {1}]
  %4 = xla_tuple %s2, %s3
  %s5 = sld [smem:[#allocation0]]
  $region53: #{overlap_patch_embed.2} parent=0
    _
  %s7 = ssub.s32 1, %s5
  %s8 = scalar_select 0, %s7, %s5
  loop: start=0, step=1, limit=6
  $region2: #{overlap_patch_embed.2} parent=0 // loop_pre_header
    _
  $region3: #{overlap_patch_embed.2} parent=0 // loop_header
    %s10 = sphi 0, %s14
    %p11 = scmp.ge.s32.totalorder %s10, 6
    %s20 = sphi 0, %s22
    %s23 = sphi 0, %s20
    %s24 = sphi 0, %s23
    %s40 = sphi 0, %s24
    %s44 = sphi 0, %s44
    %s46 = sphi 0, %s44
    %s47 = sphi 0, %s46
    %s61 = sphi 0, %s47
    %s67 = sphi 0, %s69
    %s70 = sphi 0, %s67
    %s71 = sphi 0, %s70
    %s87 = sphi 0, %s71
    %s91 = sphi 0, %s91
    %s93 = sphi 0, %s91
    %s94 = sphi 0, %s93
    %s108 = sphi 0, %s94
  $region4: #{overlap_patch_embed.2} parent=0 // loop_header_branch
    %13 = sbr.rel (%p11) target = $region8
  $region5: #{overlap_patch_embed.2} parent=0 // loop_body
    %s15 = ssub.s32 %s10, 1
    %s16 = ssub.s32 %s10, 2
    %s17 = sadd.s32 %s10, 1
    %s18 = ssub.s32 %s10, %s17
    %p19 = scmp.eq.s32.totalorder %s18, 0
    %s21 = sadd.s32 %s20, 1
    %s22 = scalar_select %p19, %s20, %s21
    %p25 = pneg %p19
    %p26 = scmp.eq.s32.totalorder %s10, 3
    %p27 = por %p25, %p26
    %p28 = scmp.ne.s32.totalorder %s20, %s23
    %p29 = scmp.eq.s32.totalorder %s10, 0
    %p30 = por %p28, %p29
    %p31 = scmp.ne.s32.totalorder %s20, %s23
    %p32 = scmp.eq.s32.totalorder %s15, 3
    %p33 = por %p31, %p32
    %p34 = scmp.ne.s32.totalorder %s23, %s24
    %p35 = scmp.eq.s32.totalorder %s15, 0
    %p36 = por %p34, %p35
    %p37 = scmp.ne.s32.totalorder %s23, %s24
    %p38 = scmp.eq.s32.totalorder %s16, 3
    %p39 = por %p37, %p38
    %p41 = scmp.ne.s32.totalorder %s24, %s40
    %p42 = scmp.eq.s32.totalorder %s16, 0
    %p43 = por %p41, %p42
    %s45 = sadd.s32 %s44, 1
    %p48 = scmp.eq.s32.totalorder %s10, 3
    %p49 = scmp.ne.s32.totalorder %s44, %s46
    %p50 = scmp.eq.s32.totalorder %s10, 0
    %p51 = por %p49, %p50
    %p52 = scmp.ne.s32.totalorder %s44, %s46
    %p53 = scmp.eq.s32.totalorder %s15, 3
    %p54 = por %p52, %p53
    %p55 = scmp.ne.s32.totalorder %s46, %s47
    %p56 = scmp.eq.s32.totalorder %s15, 0
    %p57 = por %p55, %p56
    %p58 = scmp.ne.s32.totalorder %s46, %s47
    %p59 = scmp.eq.s32.totalorder %s16, 3
    %p60 = por %p58, %p59
    %p62 = scmp.ne.s32.totalorder %s47, %s61
    %p63 = scmp.eq.s32.totalorder %s16, 0
    %p64 = por %p62, %p63
    %s65 = ssub.s32 %s10, %s17
    %p66 = scmp.eq.s32.totalorder %s65, 0
    %s68 = sadd.s32 %s67, 1
    %s69 = scalar_select %p66, %s67, %s68
    %p72 = pneg %p66
    %p73 = scmp.eq.s32.totalorder %s10, 3
    %p74 = por %p72, %p73
    %p75 = scmp.ne.s32.totalorder %s67, %s70
    %p76 = scmp.eq.s32.totalorder %s10, 0
    %p77 = por %p75, %p76
    %p78 = scmp.ne.s32.totalorder %s67, %s70
    %p79 = scmp.eq.s32.totalorder %s15, 3
    %p80 = por %p78, %p79
    %p81 = scmp.ne.s32.totalorder %s70, %s71
    %p82 = scmp.eq.s32.totalorder %s15, 0
    %p83 = por %p81, %p82
    %p84 = scmp.ne.s32.totalorder %s70, %s71
    %p85 = scmp.eq.s32.totalorder %s16, 3
    %p86 = por %p84, %p85
    %p88 = scmp.ne.s32.totalorder %s71, %s87
    %p89 = scmp.eq.s32.totalorder %s16, 0
    %p90 = por %p88, %p89
    %s92 = sadd.s32 %s91, 1
    %p95 = scmp.eq.s32.totalorder %s10, 3
    %p96 = scmp.ne.s32.totalorder %s91, %s93
    %p97 = scmp.eq.s32.totalorder %s10, 0
    %p98 = por %p96, %p97
    %p99 = scmp.ne.s32.totalorder %s91, %s93
    %p100 = scmp.eq.s32.totalorder %s15, 3
    %p101 = por %p99, %p100
    %p102 = scmp.ne.s32.totalorder %s93, %s94
    %p103 = scmp.eq.s32.totalorder %s15, 0
    %p104 = por %p102, %p103
    %p105 = scmp.ne.s32.totalorder %s93, %s94
    %p106 = scmp.eq.s32.totalorder %s16, 3
    %p107 = por %p105, %p106
    %p109 = scmp.ne.s32.totalorder %s94, %s108
    %p110 = scmp.eq.s32.totalorder %s16, 0
    %p111 = por %p109, %p110
    %p112 = scmp.le.s32.totalorder 1, %s10
    %p113 = scmp.lt.s32.totalorder %s10, 5
    %p114 = pnand %p112, %p113
    %p115 = pneg %p114
    // Predicated region
    $region9: #{overlap_patch_embed.2} parent=5 // pred_check
      _
    $region10: #{overlap_patch_embed.2} parent=5 // pred_check_branch
      %117 = sbr.rel (%p114) target = $region12
    $region11: #{overlap_patch_embed.2} parent=5 // pred_region
      %s118 = ssub.s32 %s10, 1
      // Predicated region
      $region13: #{overlap_patch_embed.2} parent=11 // pred_check
        %p119 = pneg %p57
      $region14: #{overlap_patch_embed.2} parent=11 // pred_check_branch
        %121 = sbr.rel (%p119) target = $region16
      $region15: #{overlap_patch_embed.2} parent=11 // pred_region
        _
      $region16: #{overlap_patch_embed.2} parent=11 // pred_fallthru
        _
    $region12: #{overlap_patch_embed.2} parent=5 // pred_fallthru
      _
    %p122 = scmp.lt.s32.totalorder %s10, 4
    // Predicated region
    $region17: #{overlap_patch_embed.2} parent=5 // pred_check
      %p123 = pneg %p122
    $region18: #{overlap_patch_embed.2} parent=5 // pred_check_branch
      %125 = sbr.rel (%p123) target = $region20
    $region19: #{overlap_patch_embed.2} parent=5 // pred_region
      // Predicated region
      $region21: #{overlap_patch_embed.2} parent=19 // pred_check
        %p126 = pneg %p30
      $region22: #{overlap_patch_embed.2} parent=19 // pred_check_branch
        %128 = sbr.rel (%p126) target = $region24
      $region23: #{overlap_patch_embed.2} parent=19 // pred_region
        %s129 = smul.u32 4, %s10
        %p130 = scmp.lt.s32.totalorder %s129, 15
        %s131 = scalar_select %p130, %s129, 15
        %s132 = smul.addr %s131, 4
        %s133 = scalar_lea.vmem %s0, %s132
        %s134 = smul.u32 4, %s10
      $region24: #{overlap_patch_embed.2} parent=19 // pred_fallthru
        _
    $region20: #{overlap_patch_embed.2} parent=5 // pred_fallthru
      _
    %p135 = scmp.le.s32.totalorder 1, %s10
    %p136 = scmp.lt.s32.totalorder %s10, 5
    %p137 = pnand %p135, %p136
    %p138 = pneg %p137
    // Predicated region
    $region25: #{overlap_patch_embed.2} parent=5 // pred_check
      _
    $region26: #{overlap_patch_embed.2} parent=5 // pred_check_branch
      %140 = sbr.rel (%p137) target = $region28
    $region27: #{overlap_patch_embed.2} parent=5 // pred_region
      %s141 = ssub.s32 %s10, 1
      %s142 = smul.u32 4, %s15
      %p143 = scmp.lt.s32.totalorder %s142, 15
      %s144 = scalar_select %p143, %s142, 15
      %s145 = smul.addr %s144, 4
      %s146 = scalar_lea.vmem %s0, %s145
      %p147 = pneg %p36
      %p148 = pneg %p33
      %p149 = pneg %p57
      %p150 = pneg %p54
      %p151 = pneg %p83
      %p152 = pneg %p80
      %s153 = smul.u32 4, %s15
      %p154 = scmp.lt.s32.totalorder %s153, 15
      %s155 = scalar_select %p154, %s153, 15
      %s156 = smul.addr %s155, 8
      %s157 = scalar_lea.vmem %s2, %s156
      %p158 = pneg %p104
      %p159 = pneg %p101
      %s160 = smul.u32 4, %s15
      %p161 = scmp.lt.s32.totalorder %s160, 15
      %s162 = scalar_select %p161, %s160, 15
      %s163 = smul.addr %s162, 4
      %s164 = scalar_lea.vmem %s0, %s163
      %s165 = smul.u32 4, %s15
      %s166 = smul.u32 4, %s15
      %p167 = scmp.lt.s32.totalorder %s166, 15
      %s168 = scalar_select %p167, %s166, 15
      %s169 = smul.addr %s168, 8
      %s170 = scalar_lea.vmem %s2, %s169
      %s171 = smul.u32 4, %s15
      %p173 = scmp.eq.s32.totalorder %s15, 0
      // Predicated region
      $region29: #{overlap_patch_embed.2} parent=27 // pred_check
        %p174 = pneg %p173
      $region30: #{overlap_patch_embed.2} parent=27 // pred_check_branch
        %176 = sbr.rel (%p174) target = $region32
      $region31: #{overlap_patch_embed.2} parent=27 // pred_region
        %177 = vst [vmem:[%s3] sm:$0xff] 0.0
        %178 = vst [vmem:[%s3 + $0x8] sm:$0xff] 0.0
      $region32: #{overlap_patch_embed.2} parent=27 // pred_fallthru
        _
      %v179 = vld [vmem:[%s164] sm:$0xf]
      %v180 = vld [vmem:[%s164 + $0x4] sm:$0xf]
      %v181 = vld [vmem:[%s164 + $0x8] sm:$0xf]
      %v182 = vld [vmem:[%s164 + $0xc] sm:$0xf]
      %v183 = vld [vmem:[%s1] sm:$0xf]
      %v184 = vld [vmem:[%s1 + $0x4] sm:$0xf]
      %v189 = vunpack.c.l.b16 %v179
      %v190 = vunpack.c.l.b16 %v180
      %v191 = vunpack.c.l.b16 %v181
      %v192 = vunpack.c.l.b16 %v182
      %v193 = vpack.c.b16 %v190, %v189
      %v194 = vpack.c.b16 %v192, %v191
      %v197 = vunpack.c.l.b16 %v183
      %v198 = vunpack.c.l.b16 %v184
      %v199 = vpack.c.b16 %v198, %v197
      %vm201 = vcmask 130048
      %v203 = vsel %vm201, %v193, 0
      %v206 = vsel %vm201, %v194, 0
      %208 = vmatprep.subr.bf16.mxu0 0
      %209 = vmatpush1.bf16.msra.mxu0 0
      %210 = vmatprep.subr.bf16.mxu0 0
      %211 = vmatpush1.bf16.msra.mxu0 0
      %212 = vmatprep.subr.bf16.mxu0 0
      %213 = vmatpush1.bf16.msra.mxu0 0
      %214 = vmatprep.subr.bf16.mxu0 0
      %215 = vmatpush1.bf16.msra.mxu0 0
      %216 = vmatprep.subr.bf16.mxu0 0
      %217 = vmatpush1.bf16.msra.mxu0 0
      %218 = vmatprep.subr.bf16.mxu0 0
      %219 = vmatpush1.bf16.msra.mxu0 0
      %220 = vmatprep.subr.bf16.mxu0 0
      %221 = vmatpush1.bf16.msra.mxu0 0
      %222 = vmatprep.subr.bf16.mxu0 0
      %223 = vmatpush1.bf16.msra.mxu0 %v199
      %224 = vmatprep.subr.bf16.mxu0 0
      %225 = vmatpush2.bf16.msra.mxu0 0
      %226 = vmatprep.subr.bf16.mxu0 0
      %227 = vmatpush2.bf16.msra.mxu0 0
      %228 = vmatprep.subr.bf16.mxu0 0
      %229 = vmatpush2.bf16.msra.mxu0 0
      %230 = vmatprep.subr.bf16.mxu0 0
      %231 = vmatpush2.bf16.msra.mxu0 0
      %232 = vmatprep.subr.bf16.mxu0 0
      %233 = vmatpush2.bf16.msra.mxu0 0
      %234 = vmatprep.subr.bf16.mxu0 0
      %235 = vmatpush2.bf16.msra.mxu0 0
      %236 = vmatprep.subr.bf16.mxu0 0
      %237 = vmatpush2.bf16.msra.mxu0 0
      %238 = vmatprep.subr.bf16.mxu0 0
      %239 = vmatpush2.bf16.msra.mxu0 0
      %240 = vmatprep.mubr.bf16.mxu0 0
      %241 = vmatmul.mubr.bf16.gmra.mxu0 %v203
      %v242 = vpop.f32.mrf.mxu0
      %v243 = vadd.f32 0.0, %v242
      %v244 = vpop.f32.mrf.mxu0
      %v245 = vpop.f32.mrf.mxu0
      %v246 = vadd.f32 0.0, %v245
      %v247 = vpop.f32.mrf.mxu0
      %248 = vmatprep.mubr.bf16.mxu0 0
      %249 = vmatmul.mubr.bf16.gmra.mxu0 %v206
      %v250 = vpop.f32.mrf.mxu0
      %v251 = vadd.f32 0.0, %v250
      %v252 = vpop.f32.mrf.mxu0
      %v253 = vpop.f32.mrf.mxu0
      %v254 = vadd.f32 0.0, %v253
      %v255 = vpop.f32.mrf.mxu0
      %256 = vdwg.mxu0
      %257 = vst [vmem:[%s170] sm:$0xff] %v243
      %258 = vst [vmem:[%s170 + $0x8] sm:$0xff] %v246
      %259 = vst [vmem:[%s170 + $0x10] sm:$0xff] %v251
      %260 = vst [vmem:[%s170 + $0x18] sm:$0xff] %v254
      %v261 = vld [vmem:[%s3] sm:$0xff]
      %v262 = vadd.f32 %v243, %v246
      %v263 = vadd.f32 %v262, %v251
      %v264 = vadd.f32 %v263, %v254
      %v265 = vadd.f32 %v261, %v264
      %266 = vst [vmem:[%s3] sm:$0xff] %v265
      %v267 = vld [vmem:[%s3 + $0x8] sm:$0xff]
      %v268 = vmul.f32 %v243, %v243
      %v269 = vmul.f32 %v246, %v246
      %v270 = vmul.f32 %v251, %v251
      %v271 = vmul.f32 %v254, %v254
      %v272 = vadd.f32 %v268, %v269
      %v273 = vadd.f32 %v272, %v270
      %v274 = vadd.f32 %v273, %v271
      %v275 = vadd.f32 %v267, %v274
      %276 = vst [vmem:[%s3 + $0x8] sm:$0xff] %v275
      %s277 = smul.u32 4, %s15
      %p278 = scmp.lt.s32.totalorder %s277, 15
      %s279 = scalar_select %p278, %s277, 15
      %s280 = smul.addr %s279, 8
      %s281 = scalar_lea.vmem %s2, %s280
      // Predicated region
      $region33: #{overlap_patch_embed.2} parent=27 // pred_check
        %p282 = pneg %p80
      $region34: #{overlap_patch_embed.2} parent=27 // pred_check_branch
        %284 = sbr.rel (%p282) target = $region36
      $region35: #{overlap_patch_embed.2} parent=27 // pred_region
        %s285 = smul.u32 4, %s15
      $region36: #{overlap_patch_embed.2} parent=27 // pred_fallthru
        _
      // Predicated region
      $region37: #{overlap_patch_embed.2} parent=27 // pred_check
        %p286 = pneg %p101
      $region38: #{overlap_patch_embed.2} parent=27 // pred_check_branch
        %288 = sbr.rel (%p286) target = $region40
      $region39: #{overlap_patch_embed.2} parent=27 // pred_region
        _
      $region40: #{overlap_patch_embed.2} parent=27 // pred_fallthru
        _
      // Predicated region
      $region41: #{overlap_patch_embed.2} parent=27 // pred_check
        %p289 = pneg %p101
      $region42: #{overlap_patch_embed.2} parent=27 // pred_check_branch
        %291 = sbr.rel (%p289) target = $region44
      $region43: #{overlap_patch_embed.2} parent=27 // pred_region
        _
      $region44: #{overlap_patch_embed.2} parent=27 // pred_fallthru
        _
    $region28: #{overlap_patch_embed.2} parent=5 // pred_fallthru
      _
    %p292 = scmp.le.s32.totalorder 2, %s10
    // Predicated region
    $region45: #{overlap_patch_embed.2} parent=5 // pred_check
      %p293 = pneg %p292
    $region46: #{overlap_patch_embed.2} parent=5 // pred_check_branch
      %295 = sbr.rel (%p293) target = $region48
    $region47: #{overlap_patch_embed.2} parent=5 // pred_region
      %s296 = ssub.s32 %s10, 2
      // Predicated region
      $region49: #{overlap_patch_embed.2} parent=47 // pred_check
        %p297 = pneg %p86
      $region50: #{overlap_patch_embed.2} parent=47 // pred_check_branch
        %299 = sbr.rel (%p297) target = $region52
      $region51: #{overlap_patch_embed.2} parent=47 // pred_region
        %s300 = smul.u32 4, %s16
        %p301 = scmp.lt.s32.totalorder %s300, 15
        %s302 = scalar_select %p301, %s300, 15
        %s303 = smul.addr %s302, 8
        %s304 = scalar_lea.vmem %s2, %s303
      $region52: #{overlap_patch_embed.2} parent=47 // pred_fallthru
        _
    $region48: #{overlap_patch_embed.2} parent=5 // pred_fallthru
      _
  $region6: #{overlap_patch_embed.2} parent=0 // loop_footer
    %s14 = sadd.s32 1, %s10
  $region7: #{overlap_patch_embed.2} parent=0 // loop_footer_branch
    %9 = sbr.rel target = $region3
  $region8: #{overlap_patch_embed.2} parent=0 // loop_exit
    _

</llo_original>
